<compile_context>
chip_gen: v7x
topology: tpu7x:2x2x1
jax: 0.10.0
libtpu: 0.0.40
codegen_flags: <defaults>
</compile_context>

<pallas_src>
import jax
import jax.numpy as jnp
from jax import lax
from jax.experimental import pallas as pl
from jax.experimental.pallas import tpu as pltpu

# ----------------------- static problem sizes -----------------------
B, C_IN, H, W = 2, 4, 16, 16       # images: (B, C_IN, H, W) NCHW at the API boundary
C_FEAT = 32                         # backbone "features" channels
C_CTX = 32                          # backbone "x_context" channels
C_OUT = C_FEAT + C_CTX              # per-image fused conv output width (64)
NUM_CLASSES = 8
KH = KW = 3                         # 3x3 conv, stride 1, SAME
K_IM2COL = KH * KW * C_IN           # 36
HW = H * W                          # 256
BK = B * K_IM2COL                   # 72  (contraction dim of the batched matmul)
BC = B * C_OUT                      # 128 (lane-dense output width)


# ============================ Fused kernel ============================
def _fused_kernel(p_ref, w_ref, b_ref, wcls_ref, bcls_ref, fc_ref, logits_ref):
    # One MXU matmul for the whole batch: the weight is block-diagonal over images, so
    # lanes [b*64:(b+1)*64] of the result are image b's fused feat|ctx conv output.
    y = jnp.dot(p_ref[...], w_ref[...], preferred_element_type=jnp.float32)   # (HW, 128) f32
    y = jnp.maximum(y + b_ref[...], 0.0)                                       # bias + ReLU
    fc_ref[...] = y                                                            # dense 128-lane store

    # Head: global average pool over H*W + classifier. wcls2 is zero on the feat lanes and
    # block-diagonal over images -> no lane slicing, per-image logits land in disjoint lanes.
    pooled = jnp.mean(y, axis=0, keepdims=True)                                # (1, 128) f32
    logits_ref[...] = (jnp.dot(pooled, wcls_ref[...],
                               preferred_element_type=jnp.float32) + bcls_ref[...])


def rcnn_fused(p2, w2, b2, wcls2, bcls2):
    """Single-step fused backbone + image-level head (whole arrays = full VMEM blocks)."""
    fc, logits_row = pl.pallas_call(
        _fused_kernel,
        grid=(1,),
        in_specs=[
            pl.BlockSpec((HW, BK), lambda i: (0, 0)),       # batched im2col patches (bf16)
            pl.BlockSpec((BK, BC), lambda i: (0, 0)),       # block-diag conv weight (bf16)
            pl.BlockSpec((1, BC), lambda i: (0, 0)),        # fused conv bias (f32)
            pl.BlockSpec((BC, BC), lambda i: (0, 0)),       # padded block-diag classifier (f32)
            pl.BlockSpec((1, BC), lambda i: (0, 0)),        # padded classifier bias (f32)
        ],
        out_specs=[
            pl.BlockSpec((HW, BC), lambda i: (0, 0)),       # lane-dense feat|ctx slab
            pl.BlockSpec((1, BC), lambda i: (0, 0)),        # lane-dense logits row
        ],
        out_shape=[
            jax.ShapeDtypeStruct((HW, BC), jnp.float32),
            jax.ShapeDtypeStruct((1, BC), jnp.float32),
        ],
        compiler_params=pltpu.CompilerParams(dimension_semantics=("arbitrary",)),
    )(p2, w2, b2, wcls2, bcls2)
    return fc, logits_row


# ============================ Wrapper glue ============================
def _im2col_pairs(images_nchw):
    """NCHW -> (HW, B*36) bf16 patch matrix; row j holds pixel j's 3x3xC_IN patch for both images."""
    x = jnp.transpose(images_nchw, (0, 2, 3, 1))                          # NHWC
    xp = jnp.pad(x, ((0, 0), (1, 1), (1, 1), (0, 0)))                     # SAME pad
    taps = [xp[:, kh:kh + H, kw:kw + W, :] for kh in range(KH) for kw in range(KW)]
    patches = jnp.concatenate(taps, axis=-1)                              # (B,H,W,36), order (kh,kw,cin)
    p2 = jnp.transpose(patches, (1, 2, 0, 3)).reshape(HW, BK)             # (256, 72)
    return p2.astype(jnp.bfloat16)


def generalized_rcnn_forward(images_nchw, prep):
    """Eval-mode forward. Returns (detections, img_level_label, logits, features, x_context)."""
    # TODO(synk): self.transform (resize/normalize) is a user-provided module; identity here.
    p2 = _im2col_pairs(images_nchw)
    fc, logits_row = rcnn_fused(p2, prep["w2"], prep["b2"], prep["wcls2"], prep["bcls2"])

    fused = jnp.transpose(fc.reshape(H, W, B, C_OUT), (2, 0, 1, 3))       # (B,H,W,64) NHWC
    features = fused[..., :C_FEAT]
    x_context = fused[..., C_FEAT:]

    img_level_logits = logits_row.reshape(B, C_OUT)[:, :NUM_CLASSES]      # (B, 8)
    # argmax(softmax(x)) == argmax(x); jnp.argmax picks the first max like torch.max(...)[1].
    img_level_label = jnp.argmax(img_level_logits, axis=-1).astype(jnp.int32) + 1

    # TODO(synk): rpn / roi_heads / transform.postprocess are arbitrary submodules (proposal
    # generation, RoI pooling, NMS) with no defined compute in this class; placeholder.
    detections = []
    return detections, img_level_label, img_level_logits, features, x_context


# ============================ Parameters ============================
def init_params(key):
    k1, k2, k3, k4, k5, k6 = jax.random.split(key, 6)
    wf = jax.random.normal(k1, (KH, KW, C_IN, C_FEAT), jnp.float32) * 0.1   # HWIO
    bf = jax.random.normal(k2, (1, C_FEAT), jnp.float32) * 0.01
    wc = jax.random.normal(k3, (KH, KW, C_IN, C_CTX), jnp.float32) * 0.1
    bc = jax.random.normal(k4, (1, C_CTX), jnp.float32) * 0.01
    wcls = jax.random.normal(k5, (C_CTX, NUM_CLASSES), jnp.float32) * 0.1
    bcls = jax.random.normal(k6, (1, NUM_CLASSES), jnp.float32) * 0.01
    return dict(wf=wf, bf=bf, wc=wc, bc=bc, wcls=wcls, bcls=bcls)


def prepare_params(params):
    """One-time weight prep, hoisted out of the per-call path."""
    w_comb = jnp.concatenate([params["wf"].reshape(K_IM2COL, C_FEAT),
                              params["wc"].reshape(K_IM2COL, C_CTX)], axis=-1)      # (36, 64)
    w2 = jnp.kron(jnp.eye(B, dtype=jnp.float32), w_comb).astype(jnp.bfloat16)       # (72, 128) block-diag
    b2 = jnp.tile(jnp.concatenate([params["bf"], params["bc"]], axis=-1), (1, B))   # (1, 128) f32

    wcls_pad = jnp.zeros((C_OUT, C_OUT), jnp.float32)
    wcls_pad = wcls_pad.at[C_FEAT:, :NUM_CLASSES].set(params["wcls"])               # feat rows stay 0
    wcls2 = jnp.kron(jnp.eye(B, dtype=jnp.float32), wcls_pad)                       # (128, 128)
    bcls_pad = jnp.zeros((1, C_OUT), jnp.float32).at[:, :NUM_CLASSES].set(params["bcls"])
    bcls2 = jnp.tile(bcls_pad, (1, B))                                              # (1, 128)
    return dict(w2=w2, b2=b2, wcls2=wcls2, bcls2=bcls2)


# ============================ Reference check ============================
def _reference(images_nchw, params):
    """Pure-JAX reference on the same bf16-quantized conv operands the kernel uses."""
    q = lambda a: a.astype(jnp.bfloat16).astype(jnp.float32)
    x = jnp.transpose(q(images_nchw), (0, 2, 3, 1))

    def conv(x, w, b):
        y = lax.conv_general_dilated(x, q(w), (1, 1), "SAME",
                                     dimension_numbers=("NHWC", "HWIO", "NHWC"),
                                     preferred_element_type=jnp.float32,
                                     precision=lax.Precision.HIGHEST)
        return jnp.maximum(y + b.reshape(1, 1, 1, -1), 0.0)

    feat = conv(x, params["wf"], params["bf"])
    ctx = conv(x, params["wc"], params["bc"])
    pooled = jnp.mean(ctx, axis=(1, 2))
    logits = jnp.dot(pooled, params["wcls"], precision=lax.Precision.HIGHEST) + params["bcls"][0]
    label = jnp.argmax(jax.nn.softmax(logits, -1), -1).astype(jnp.int32) + 1
    return feat, ctx, logits, label


if __name__ == "__main__":
    key = jax.random.PRNGKey(0)
    pkey, xkey = jax.random.split(key)
    params = init_params(pkey)
    prep = prepare_params(params)                                  # built once at init
    images = jax.random.normal(xkey, (B, C_IN, H, W), jnp.float32)  # NCHW like PyTorch

    fwd = jax.jit(generalized_rcnn_forward)
    detections, label, logits, features, x_context = fwd(images, prep)
    jax.block_until_ready((label, logits, features, x_context))

    # correctness check against pure-JAX reference (same bf16-quantized conv operands)
    ref_feat, ref_ctx, ref_logits, ref_label = _reference(images, params)
    assert jnp.allclose(features, ref_feat, atol=1e-4, rtol=1e-4)
    assert jnp.allclose(x_context, ref_ctx, atol=1e-4, rtol=1e-4)
    assert jnp.allclose(logits, ref_logits, atol=1e-4, rtol=1e-4)
    assert jnp.array_equal(label, ref_label)

    print("KERNEL_OK")
</pallas_src>

<mosaic_0001>
module attributes {stable_mosaic.version = 11 : i64} {
  func.func @_fused_kernel(%arg0: i32, %arg1: memref<256x72xbf16, #tpu.memory_space<vmem>>, %arg2: memref<72x128xbf16, #tpu.memory_space<vmem>>, %arg3: memref<1x128xf32, #tpu.memory_space<vmem>>, %arg4: memref<128x128xf32, #tpu.memory_space<vmem>>, %arg5: memref<1x128xf32, #tpu.memory_space<vmem>>, %arg6: memref<256x128xf32, #tpu.memory_space<vmem>>, %arg7: memref<1x128xf32, #tpu.memory_space<vmem>>) attributes {dimension_semantics = [#tpu.dimension_semantics<arbitrary>], iteration_bounds = array<i64: 1>, scalar_prefetch = 0 : i64, scratch_operands = 0 : i64, tpu.core_type = #tpu.core_type<tc>, window_params = [{pipeline_mode = #tpu.pipeline_mode<synchronous>, transform_indices = @transform_0, window_bounds = array<i64: 256, 72>}, {pipeline_mode = #tpu.pipeline_mode<synchronous>, transform_indices = @transform_1, window_bounds = array<i64: 72, 128>}, {pipeline_mode = #tpu.pipeline_mode<synchronous>, transform_indices = @transform_2, window_bounds = array<i64: 1, 128>}, {pipeline_mode = #tpu.pipeline_mode<synchronous>, transform_indices = @transform_3, window_bounds = array<i64: 128, 128>}, {pipeline_mode = #tpu.pipeline_mode<synchronous>, transform_indices = @transform_4, window_bounds = array<i64: 1, 128>}, {pipeline_mode = #tpu.pipeline_mode<synchronous>, transform_indices = @transform_5, window_bounds = array<i64: 256, 128>}, {pipeline_mode = #tpu.pipeline_mode<synchronous>, transform_indices = @transform_6, window_bounds = array<i64: 1, 128>}]} {
    %c0 = arith.constant 0 : index
    %c0_0 = arith.constant 0 : index
    %0 = vector.load %arg1[%c0, %c0_0] : memref<256x72xbf16, #tpu.memory_space<vmem>>, vector<256x72xbf16>
    %c0_1 = arith.constant 0 : index
    %c0_2 = arith.constant 0 : index
    %1 = vector.load %arg2[%c0_1, %c0_2] : memref<72x128xbf16, #tpu.memory_space<vmem>>, vector<72x128xbf16>
    %cst = arith.constant dense<0.000000e+00> : vector<256x128xf32>
    %2 = tpu.matmul %0, %1, %cst {dimension_numbers = #tpu.dot_dimension_numbers<[1], [0], [0], [1], [0, 0, 1, 1], [], []>} : vector<256x72xbf16>, vector<72x128xbf16>, vector<256x128xf32> -> vector<256x128xf32>
    %c0_3 = arith.constant 0 : index
    %c0_4 = arith.constant 0 : index
    %3 = vector.load %arg3[%c0_3, %c0_4] : memref<1x128xf32, #tpu.memory_space<vmem>>, vector<1x128xf32>
    %4 = vector.broadcast %3 : vector<1x128xf32> to vector<256x128xf32>
    %5 = arith.addf %2, %4 : vector<256x128xf32>
    %cst_5 = arith.constant 0.000000e+00 : f32
    %6 = vector.broadcast %cst_5 : f32 to vector<256x128xf32>
    %7 = arith.maximumf %5, %6 : vector<256x128xf32>
    %c0_6 = arith.constant 0 : index
    %c0_7 = arith.constant 0 : index
    %8 = vector.load %arg6[%c0_6, %c0_7] : memref<256x128xf32, #tpu.memory_space<vmem>>, vector<256x128xf32>
    tpu.vector_store %arg6[%c0_6, %c0_7], %7 {strides = array<i32>} : memref<256x128xf32, #tpu.memory_space<vmem>>, vector<256x128xf32>,
    %cst_8 = arith.constant dense<0.000000e+00> : vector<128xf32>
    %9 = vector.multi_reduction <add>, %7, %cst_8 [0] : vector<256x128xf32> to vector<128xf32>
    %10 = vector.shape_cast %9 : vector<128xf32> to vector<1x128xf32>
    %cst_9 = arith.constant 2.560000e+02 : f32
    %11 = vector.broadcast %cst_9 : f32 to vector<1x128xf32>
    %12 = arith.divf %10, %11 : vector<1x128xf32>
    %c0_10 = arith.constant 0 : index
    %c0_11 = arith.constant 0 : index
    %13 = vector.load %arg4[%c0_10, %c0_11] : memref<128x128xf32, #tpu.memory_space<vmem>>, vector<128x128xf32>
    %cst_12 = arith.constant dense<0.000000e+00> : vector<1x128xf32>
    %14 = tpu.matmul %12, %13, %cst_12 {dimension_numbers = #tpu.dot_dimension_numbers<[1], [0], [0], [1], [0, 0, 1, 1], [], []>} : vector<1x128xf32>, vector<128x128xf32>, vector<1x128xf32> -> vector<1x128xf32>
    %c0_13 = arith.constant 0 : index
    %c0_14 = arith.constant 0 : index
    %15 = vector.load %arg5[%c0_13, %c0_14] : memref<1x128xf32, #tpu.memory_space<vmem>>, vector<1x128xf32>
    %16 = arith.addf %14, %15 : vector<1x128xf32>
    %c0_15 = arith.constant 0 : index
    %c0_16 = arith.constant 0 : index
    %17 = vector.load %arg7[%c0_15, %c0_16] : memref<1x128xf32, #tpu.memory_space<vmem>>, vector<1x128xf32>
    tpu.vector_store %arg7[%c0_15, %c0_16], %16 {strides = array<i32>} : memref<1x128xf32, #tpu.memory_space<vmem>>, vector<1x128xf32>,
    return
  }
  func.func @transform_0(%arg0: i32) -> (i32, i32) {
    %c0_i32 = arith.constant 0 : i32
    %c0_i32_0 = arith.constant 0 : i32
    %c0_i32_1 = arith.constant 0 : i32
    return %c0_i32, %c0_i32_0 : i32, i32
  }
  func.func @transform_1(%arg0: i32) -> (i32, i32) {
    %c0_i32 = arith.constant 0 : i32
    %c0_i32_0 = arith.constant 0 : i32
    %c0_i32_1 = arith.constant 0 : i32
    return %c0_i32, %c0_i32_0 : i32, i32
  }
  func.func @transform_2(%arg0: i32) -> (i32, i32) {
    %c0_i32 = arith.constant 0 : i32
    %c0_i32_0 = arith.constant 0 : i32
    %c0_i32_1 = arith.constant 0 : i32
    return %c0_i32, %c0_i32_0 : i32, i32
  }
  func.func @transform_3(%arg0: i32) -> (i32, i32) {
    %c0_i32 = arith.constant 0 : i32
    %c0_i32_0 = arith.constant 0 : i32
    %c0_i32_1 = arith.constant 0 : i32
    return %c0_i32, %c0_i32_0 : i32, i32
  }
  func.func @transform_4(%arg0: i32) -> (i32, i32) {
    %c0_i32 = arith.constant 0 : i32
    %c0_i32_0 = arith.constant 0 : i32
    %c0_i32_1 = arith.constant 0 : i32
    return %c0_i32, %c0_i32_0 : i32, i32
  }
  func.func @transform_5(%arg0: i32) -> (i32, i32) {
    %c0_i32 = arith.constant 0 : i32
    %c0_i32_0 = arith.constant 0 : i32
    %c0_i32_1 = arith.constant 0 : i32
    return %c0_i32, %c0_i32_0 : i32, i32
  }
  func.func @transform_6(%arg0: i32) -> (i32, i32) {
    %c0_i32 = arith.constant 0 : i32
    %c0_i32_0 = arith.constant 0 : i32
    %c0_i32_1 = arith.constant 0 : i32
    return %c0_i32, %c0_i32_0 : i32, i32
  }
}

</mosaic_0001>

<llo_original>
// kernel: generalized_rcnn_forward.1
$region0: #{generalized_rcnn_forward.1}
  #allocation0 [shape = 'u32[]', space=smem, size = 0x4, offset = 0x4, fixed_abs, tag = 'smem constant byte address 0x4 - core index']
  #allocation1 [shape = 'u32[144,128]{1,0:T(1,128)}', space=vmem, size = 0x12000, scoped, tag = 'internal scratch']
  %s0 = inlined_call_operand.vmem [shape: bf16[256,72], index: 0, kind: input, shape index: {}]
  %s1 = inlined_call_operand.vmem [shape: bf16[72,128], index: 1, kind: input, shape index: {}]
  %s2 = inlined_call_operand.vmem [shape: f32[1,128], index: 2, kind: input, shape index: {}]
  %s3 = inlined_call_operand.vmem [shape: f32[128,128], index: 3, kind: input, shape index: {}]
  %s4 = inlined_call_operand.vmem [shape: f32[1,128], index: 4, kind: input, shape index: {}]
  %s5 = inlined_call_operand.vmem [shape: f32[256,128], index: 5, kind: output, shape index: {0}]
  %s6 = inlined_call_operand.vmem [shape: f32[1,128], index: 6, kind: output, shape index: {1}]
  %7 = xla_tuple %s5, %s6
  %s8 = sld [smem:[#allocation0]]
  $region38: #{generalized_rcnn_forward.1} parent=0
    _
  %s10 = ssub.s32 1, %s8
  %s11 = scalar_select 0, %s10, %s8
  // Predicated region
  $region2: #{generalized_rcnn_forward.1} parent=0 // pred_check
    _
  $region3: #{generalized_rcnn_forward.1} parent=0 // pred_check_branch
    %13 = sbr.rel (0) target = $region5
  $region4: #{generalized_rcnn_forward.1} parent=0 // pred_region
    _
  $region5: #{generalized_rcnn_forward.1} parent=0 // pred_fallthru
    _
  // Predicated region
  $region6: #{generalized_rcnn_forward.1} parent=0 // pred_check
    _
  $region7: #{generalized_rcnn_forward.1} parent=0 // pred_check_branch
    %15 = sbr.rel (0) target = $region9
  $region8: #{generalized_rcnn_forward.1} parent=0 // pred_region
    _
  $region9: #{generalized_rcnn_forward.1} parent=0 // pred_fallthru
    _
  // Predicated region
  $region10: #{generalized_rcnn_forward.1} parent=0 // pred_check
    _
  $region11: #{generalized_rcnn_forward.1} parent=0 // pred_check_branch
    %17 = sbr.rel (0) target = $region13
  $region12: #{generalized_rcnn_forward.1} parent=0 // pred_region
    _
  $region13: #{generalized_rcnn_forward.1} parent=0 // pred_fallthru
    _
  // Predicated region
  $region14: #{generalized_rcnn_forward.1} parent=0 // pred_check
    _
  $region15: #{generalized_rcnn_forward.1} parent=0 // pred_check_branch
    %19 = sbr.rel (0) target = $region17
  $region16: #{generalized_rcnn_forward.1} parent=0 // pred_region
    _
  $region17: #{generalized_rcnn_forward.1} parent=0 // pred_fallthru
    _
  // Predicated region
  $region18: #{generalized_rcnn_forward.1} parent=0 // pred_check
    _
  $region19: #{generalized_rcnn_forward.1} parent=0 // pred_check_branch
    %21 = sbr.rel (0) target = $region21
  $region20: #{generalized_rcnn_forward.1} parent=0 // pred_region
    _
  $region21: #{generalized_rcnn_forward.1} parent=0 // pred_fallthru
    _
  %v23 = vld [vmem:[%s0] sm:$0xf]
  %v24 = vld [vmem:[%s0 + $0x4] sm:$0xf]
  %v25 = vld [vmem:[%s0 + $0x8] sm:$0xf]
  %v26 = vld [vmem:[%s0 + $0xc] sm:$0xf]
  %v27 = vld [vmem:[%s0 + $0x10] sm:$0xf]
  %v28 = vld [vmem:[%s0 + $0x14] sm:$0xf]
  %v29 = vld [vmem:[%s0 + $0x18] sm:$0xf]
  %v30 = vld [vmem:[%s0 + $0x1c] sm:$0xf]
  %v31 = vld [vmem:[%s0 + $0x20] sm:$0xf]
  %v32 = vld [vmem:[%s0 + $0x24] sm:$0xf]
  %v33 = vld [vmem:[%s0 + $0x28] sm:$0xf]
  %v34 = vld [vmem:[%s0 + $0x2c] sm:$0xf]
  %v35 = vld [vmem:[%s0 + $0x30] sm:$0xf]
  %v36 = vld [vmem:[%s0 + $0x34] sm:$0xf]
  %v37 = vld [vmem:[%s0 + $0x38] sm:$0xf]
  %v38 = vld [vmem:[%s0 + $0x3c] sm:$0xf]
  %v39 = vld [vmem:[%s0 + $0x40] sm:$0xf]
  %v40 = vld [vmem:[%s0 + $0x44] sm:$0xf]
  %v41 = vld [vmem:[%s0 + $0x48] sm:$0xf]
  %v42 = vld [vmem:[%s0 + $0x4c] sm:$0xf]
  %v43 = vld [vmem:[%s0 + $0x50] sm:$0xf]
  %v44 = vld [vmem:[%s0 + $0x54] sm:$0xf]
  %v45 = vld [vmem:[%s0 + $0x58] sm:$0xf]
  %v46 = vld [vmem:[%s0 + $0x5c] sm:$0xf]
  %v47 = vld [vmem:[%s0 + $0x60] sm:$0xf]
  %v48 = vld [vmem:[%s0 + $0x64] sm:$0xf]
  %v49 = vld [vmem:[%s0 + $0x68] sm:$0xf]
  %v50 = vld [vmem:[%s0 + $0x6c] sm:$0xf]
  %v51 = vld [vmem:[%s0 + $0x70] sm:$0xf]
  %v52 = vld [vmem:[%s0 + $0x74] sm:$0xf]
  %v53 = vld [vmem:[%s0 + $0x78] sm:$0xf]
  %v54 = vld [vmem:[%s0 + $0x7c] sm:$0xf]
  %v55 = vld [vmem:[%s1] sm:$0xf]
  %v56 = vld [vmem:[%s1 + $0x4] sm:$0xf]
  %v57 = vld [vmem:[%s1 + $0x8] sm:$0xf]
  %v58 = vld [vmem:[%s1 + $0xc] sm:$0xf]
  %v59 = vld [vmem:[%s1 + $0x10] sm:$0xf]
  %v60 = vld [vmem:[%s1 + $0x14] sm:$0xf]
  %v61 = vld [vmem:[%s1 + $0x18] sm:$0xf]
  %v62 = vld [vmem:[%s1 + $0x1c] sm:$0xf]
  %v63 = vld [vmem:[%s1 + $0x20] sm:$0xf]
  %v64 = vld [vmem:[%s2] sm:$0x1]
  %v66 = vlaneseq
  %v67 = vshrl.u32 %v66, 7
  %v68 = vsub.s32 0, %v67
  %v69 = vrot.slane %v64, %v68
  %v103 = vunpack.c.l.b16 %v23
  %v104 = vunpack.c.l.b16 %v24
  %v105 = vunpack.c.l.b16 %v25
  %v106 = vunpack.c.l.b16 %v26
  %v107 = vunpack.c.l.b16 %v27
  %v108 = vunpack.c.l.b16 %v28
  %v109 = vunpack.c.l.b16 %v29
  %v110 = vunpack.c.l.b16 %v30
  %v111 = vunpack.c.l.b16 %v31
  %v112 = vunpack.c.l.b16 %v32
  %v113 = vunpack.c.l.b16 %v33
  %v114 = vunpack.c.l.b16 %v34
  %v115 = vunpack.c.l.b16 %v35
  %v116 = vunpack.c.l.b16 %v36
  %v117 = vunpack.c.l.b16 %v37
  %v118 = vunpack.c.l.b16 %v38
  %v119 = vunpack.c.l.b16 %v39
  %v120 = vunpack.c.l.b16 %v40
  %v121 = vunpack.c.l.b16 %v41
  %v122 = vunpack.c.l.b16 %v42
  %v123 = vunpack.c.l.b16 %v43
  %v124 = vunpack.c.l.b16 %v44
  %v125 = vunpack.c.l.b16 %v45
  %v126 = vunpack.c.l.b16 %v46
  %v127 = vunpack.c.l.b16 %v47
  %v128 = vunpack.c.l.b16 %v48
  %v129 = vunpack.c.l.b16 %v49
  %v130 = vunpack.c.l.b16 %v50
  %v131 = vunpack.c.l.b16 %v51
  %v132 = vunpack.c.l.b16 %v52
  %v133 = vunpack.c.l.b16 %v53
  %v134 = vunpack.c.l.b16 %v54
  %v135 = vpack.c.b16 %v104, %v103
  %v136 = vpack.c.b16 %v106, %v105
  %v137 = vpack.c.b16 %v108, %v107
  %v138 = vpack.c.b16 %v110, %v109
  %v139 = vpack.c.b16 %v112, %v111
  %v140 = vpack.c.b16 %v114, %v113
  %v141 = vpack.c.b16 %v116, %v115
  %v142 = vpack.c.b16 %v118, %v117
  %v143 = vpack.c.b16 %v120, %v119
  %v144 = vpack.c.b16 %v122, %v121
  %v145 = vpack.c.b16 %v124, %v123
  %v146 = vpack.c.b16 %v126, %v125
  %v147 = vpack.c.b16 %v128, %v127
  %v148 = vpack.c.b16 %v130, %v129
  %v149 = vpack.c.b16 %v132, %v131
  %v150 = vpack.c.b16 %v134, %v133
  %v160 = vunpack.c.l.b16 %v55
  %v161 = vunpack.c.l.b16 %v56
  %v162 = vunpack.c.l.b16 %v57
  %v163 = vunpack.c.l.b16 %v58
  %v164 = vunpack.c.l.b16 %v59
  %v165 = vunpack.c.l.b16 %v60
  %v166 = vunpack.c.l.b16 %v61
  %v167 = vunpack.c.l.b16 %v62
  %v168 = vunpack.c.l.b16 %v63
  %v169 = vpack.c.b16 %v161, %v160
  %v170 = vpack.c.b16 %v163, %v162
  %v171 = vpack.c.b16 %v165, %v164
  %v172 = vpack.c.b16 %v167, %v166
  %v173 = vpack.c.b16 %v168, %v168
  %vm178 = vcmask 588800
  %v180 = vsel %vm178, %v135, 0
  %v183 = vsel %vm178, %v136, 0
  %v186 = vsel %vm178, %v137, 0
  %v189 = vsel %vm178, %v138, 0
  %v192 = vsel %vm178, %v139, 0
  %v195 = vsel %vm178, %v140, 0
  %v198 = vsel %vm178, %v141, 0
  %v201 = vsel %vm178, %v142, 0
  %v204 = vsel %vm178, %v143, 0
  %v207 = vsel %vm178, %v144, 0
  %v210 = vsel %vm178, %v145, 0
  %v213 = vsel %vm178, %v146, 0
  %v216 = vsel %vm178, %v147, 0
  %v219 = vsel %vm178, %v148, 0
  %v222 = vsel %vm178, %v149, 0
  %v225 = vsel %vm178, %v150, 0
  %vm227 = vcmask 1043456
  %v229 = vsel %vm227, %v173, 0
  %231 = vmatprep.subr.bf16.mxu0 0
  %232 = vmatpush1.bf16.msra.mxu0 %v169
  %233 = vmatprep.subr.bf16.mxu0 0
  %234 = vmatpush1.bf16.msra.mxu0 %v170
  %235 = vmatprep.subr.bf16.mxu0 0
  %236 = vmatpush1.bf16.msra.mxu0 %v171
  %237 = vmatprep.subr.bf16.mxu0 0
  %238 = vmatpush1.bf16.msra.mxu0 %v172
  %239 = vmatprep.subr.bf16.mxu0 0
  %240 = vmatpush1.bf16.msra.mxu0 %v229
  %241 = vmatprep.subr.bf16.mxu0 0
  %242 = vmatpush1.bf16.msra.mxu0 0
  %243 = vmatprep.subr.bf16.mxu0 0
  %244 = vmatpush1.bf16.msra.mxu0 0
  %245 = vmatprep.subr.bf16.mxu0 0
  %246 = vmatpush1.bf16.msra.mxu0 0
  %247 = vmatprep.subr.bf16.mxu0 0
  %248 = vmatpush1.bf16.msra.mxu0 0
  %249 = vmatprep.subr.bf16.mxu0 0
  %250 = vmatpush1.bf16.msra.mxu0 0
  %251 = vmatprep.subr.bf16.mxu0 0
  %252 = vmatpush1.bf16.msra.mxu0 0
  %253 = vmatprep.subr.bf16.mxu0 0
  %254 = vmatpush1.bf16.msra.mxu0 0
  %255 = vmatprep.subr.bf16.mxu0 0
  %256 = vmatpush1.bf16.msra.mxu0 0
  %257 = vmatprep.subr.bf16.mxu0 0
  %258 = vmatpush1.bf16.msra.mxu0 0
  %259 = vmatprep.subr.bf16.mxu0 0
  %260 = vmatpush1.bf16.msra.mxu0 0
  %261 = vmatprep.subr.bf16.mxu0 0
  %262 = vmatpush1.bf16.msra.mxu0 0
  %263 = vmatprep.mubr.bf16.mxu0 0
  %264 = vmatmul.mubr.bf16.gmra.mrb[0].mxu0 %v180
  %v265 = vpop.f32.mrb[0].mxu0
  %v266 = vadd.f32 %v69, %v265
  %v267 = vpop.f32.mrb[0].mxu0
  %v268 = vpop.f32.mrb[0].mxu0
  %v269 = vadd.f32 %v69, %v268
  %v270 = vpop.f32.mrb[0].mxu0
  %271 = vmatprep.mubr.bf16.mxu0 0
  %272 = vmatmul.mubr.bf16.gmra.mrb[0].mxu0 %v183
  %v273 = vpop.f32.mrb[0].mxu0
  %v274 = vadd.f32 %v69, %v273
  %v275 = vpop.f32.mrb[0].mxu0
  %v276 = vpop.f32.mrb[0].mxu0
  %v277 = vadd.f32 %v69, %v276
  %v278 = vpop.f32.mrb[0].mxu0
  %279 = vmatprep.mubr.bf16.mxu0 0
  %280 = vmatmul.mubr.bf16.gmra.mrb[0].mxu0 %v186
  %v281 = vpop.f32.mrb[0].mxu0
  %v282 = vadd.f32 %v69, %v281
  %v283 = vpop.f32.mrb[0].mxu0
  %v284 = vpop.f32.mrb[0].mxu0
  %v285 = vadd.f32 %v69, %v284
  %v286 = vpop.f32.mrb[0].mxu0
  %287 = vmatprep.mubr.bf16.mxu0 0
  %288 = vmatmul.mubr.bf16.gmra.mrb[0].mxu0 %v189
  %v289 = vpop.f32.mrb[0].mxu0
  %v290 = vadd.f32 %v69, %v289
  %v291 = vpop.f32.mrb[0].mxu0
  %v292 = vpop.f32.mrb[0].mxu0
  %v293 = vadd.f32 %v69, %v292
  %v294 = vpop.f32.mrb[0].mxu0
  %295 = vmatprep.mubr.bf16.mxu0 0
  %296 = vmatmul.mubr.bf16.gmra.mrb[0].mxu0 %v192
  %v297 = vpop.f32.mrb[0].mxu0
  %v298 = vadd.f32 %v69, %v297
  %v299 = vpop.f32.mrb[0].mxu0
  %v300 = vpop.f32.mrb[0].mxu0
  %v301 = vadd.f32 %v69, %v300
  %v302 = vpop.f32.mrb[0].mxu0
  %303 = vmatprep.mubr.bf16.mxu0 0
  %304 = vmatmul.mubr.bf16.gmra.mrb[0].mxu0 %v195
  %v305 = vpop.f32.mrb[0].mxu0
  %v306 = vadd.f32 %v69, %v305
  %v307 = vpop.f32.mrb[0].mxu0
  %v308 = vpop.f32.mrb[0].mxu0
  %v309 = vadd.f32 %v69, %v308
  %v310 = vpop.f32.mrb[0].mxu0
  %311 = vmatprep.mubr.bf16.mxu0 0
  %312 = vmatmul.mubr.bf16.gmra.mrb[0].mxu0 %v198
  %v313 = vpop.f32.mrb[0].mxu0
  %v314 = vadd.f32 %v69, %v313
  %v315 = vpop.f32.mrb[0].mxu0
  %v316 = vpop.f32.mrb[0].mxu0
  %v317 = vadd.f32 %v69, %v316
  %v318 = vpop.f32.mrb[0].mxu0
  %319 = vmatprep.mubr.bf16.mxu0 0
  %320 = vmatmul.mubr.bf16.gmra.mrb[0].mxu0 %v201
  %v321 = vpop.f32.mrb[0].mxu0
  %v322 = vadd.f32 %v69, %v321
  %v323 = vpop.f32.mrb[0].mxu0
  %v324 = vpop.f32.mrb[0].mxu0
  %v325 = vadd.f32 %v69, %v324
  %v326 = vpop.f32.mrb[0].mxu0
  %327 = vmatprep.mubr.bf16.mxu0 0
  %328 = vmatmul.mubr.bf16.gmra.mrb[0].mxu0 %v204
  %v329 = vpop.f32.mrb[0].mxu0
  %v330 = vadd.f32 %v69, %v329
  %v331 = vpop.f32.mrb[0].mxu0
  %v332 = vpop.f32.mrb[0].mxu0
  %v333 = vadd.f32 %v69, %v332
  %v334 = vpop.f32.mrb[0].mxu0
  %335 = vmatprep.mubr.bf16.mxu0 0
  %336 = vmatmul.mubr.bf16.gmra.mrb[0].mxu0 %v207
  %v337 = vpop.f32.mrb[0].mxu0
  %v338 = vadd.f32 %v69, %v337
  %v339 = vpop.f32.mrb[0].mxu0
  %v340 = vpop.f32.mrb[0].mxu0
  %v341 = vadd.f32 %v69, %v340
  %v342 = vpop.f32.mrb[0].mxu0
  %343 = vmatprep.mubr.bf16.mxu0 0
  %344 = vmatmul.mubr.bf16.gmra.mrb[0].mxu0 %v210
  %v345 = vpop.f32.mrb[0].mxu0
  %v346 = vadd.f32 %v69, %v345
  %v347 = vpop.f32.mrb[0].mxu0
  %v348 = vpop.f32.mrb[0].mxu0
  %v349 = vadd.f32 %v69, %v348
  %v350 = vpop.f32.mrb[0].mxu0
  %351 = vmatprep.mubr.bf16.mxu0 0
  %352 = vmatmul.mubr.bf16.gmra.mrb[0].mxu0 %v213
  %v353 = vpop.f32.mrb[0].mxu0
  %v354 = vadd.f32 %v69, %v353
  %v355 = vpop.f32.mrb[0].mxu0
  %v356 = vpop.f32.mrb[0].mxu0
  %v357 = vadd.f32 %v69, %v356
  %v358 = vpop.f32.mrb[0].mxu0
  %359 = vmatprep.mubr.bf16.mxu0 0
  %360 = vmatmul.mubr.bf16.gmra.mrb[0].mxu0 %v216
  %v361 = vpop.f32.mrb[0].mxu0
  %v362 = vadd.f32 %v69, %v361
  %v363 = vpop.f32.mrb[0].mxu0
  %v364 = vpop.f32.mrb[0].mxu0
  %v365 = vadd.f32 %v69, %v364
  %v366 = vpop.f32.mrb[0].mxu0
  %367 = vmatprep.mubr.bf16.mxu0 0
  %368 = vmatmul.mubr.bf16.gmra.mrb[0].mxu0 %v219
  %v369 = vpop.f32.mrb[0].mxu0
  %v370 = vadd.f32 %v69, %v369
  %v371 = vpop.f32.mrb[0].mxu0
  %v372 = vpop.f32.mrb[0].mxu0
  %v373 = vadd.f32 %v69, %v372
  %v374 = vpop.f32.mrb[0].mxu0
  %375 = vmatprep.mubr.bf16.mxu0 0
  %376 = vmatmul.mubr.bf16.gmra.mrb[0].mxu0 %v222
  %v377 = vpop.f32.mrb[0].mxu0
  %v378 = vadd.f32 %v69, %v377
  %v379 = vpop.f32.mrb[0].mxu0
  %v380 = vpop.f32.mrb[0].mxu0
  %v381 = vadd.f32 %v69, %v380
  %v382 = vpop.f32.mrb[0].mxu0
  %383 = vmatprep.mubr.bf16.mxu0 0
  %384 = vmatmul.mubr.bf16.gmra.mrb[0].mxu0 %v225
  %v385 = vpop.f32.mrb[0].mxu0
  %v386 = vadd.f32 %v69, %v385
  %v387 = vpop.f32.mrb[0].mxu0
  %v388 = vpop.f32.mrb[0].mxu0
  %v389 = vadd.f32 %v69, %v388
  %v390 = vpop.f32.mrb[0].mxu0
  %391 = vdwg.mxu0
  %v392 = vmax.f32 %v266, 0.0
  %v393 = vmax.f32 %v269, 0.0
  %v394 = vmax.f32 %v274, 0.0
  %v395 = vmax.f32 %v277, 0.0
  %v396 = vmax.f32 %v282, 0.0
  %v397 = vmax.f32 %v285, 0.0
  %v398 = vmax.f32 %v290, 0.0
  %v399 = vmax.f32 %v293, 0.0
  %v400 = vmax.f32 %v298, 0.0
  %v401 = vmax.f32 %v301, 0.0
  %v402 = vmax.f32 %v306, 0.0
  %v403 = vmax.f32 %v309, 0.0
  %v404 = vmax.f32 %v314, 0.0
  %v405 = vmax.f32 %v317, 0.0
  %v406 = vmax.f32 %v322, 0.0
  %v407 = vmax.f32 %v325, 0.0
  %v408 = vmax.f32 %v330, 0.0
  %v409 = vmax.f32 %v333, 0.0
  %v410 = vmax.f32 %v338, 0.0
  %v411 = vmax.f32 %v341, 0.0
  %v412 = vmax.f32 %v346, 0.0
  %v413 = vmax.f32 %v349, 0.0
  %v414 = vmax.f32 %v354, 0.0
  %v415 = vmax.f32 %v357, 0.0
  %v416 = vmax.f32 %v362, 0.0
  %v417 = vmax.f32 %v365, 0.0
  %v418 = vmax.f32 %v370, 0.0
  %v419 = vmax.f32 %v373, 0.0
  %v420 = vmax.f32 %v378, 0.0
  %v421 = vmax.f32 %v381, 0.0
  %v422 = vmax.f32 %v386, 0.0
  %v423 = vmax.f32 %v389, 0.0
  %424 = vst [vmem:[%s5] sm:$0xff] %v392
  %425 = vst [vmem:[%s5 + $0x8] sm:$0xff] %v393
  %426 = vst [vmem:[%s5 + $0x10] sm:$0xff] %v394
  %427 = vst [vmem:[%s5 + $0x18] sm:$0xff] %v395
  %428 = vst [vmem:[%s5 + $0x20] sm:$0xff] %v396
  %429 = vst [vmem:[%s5 + $0x28] sm:$0xff] %v397
  %430 = vst [vmem:[%s5 + $0x30] sm:$0xff] %v398
  %431 = vst [vmem:[%s5 + $0x38] sm:$0xff] %v399
  %432 = vst [vmem:[%s5 + $0x40] sm:$0xff] %v400
  %433 = vst [vmem:[%s5 + $0x48] sm:$0xff] %v401
  %434 = vst [vmem:[%s5 + $0x50] sm:$0xff] %v402
  %435 = vst [vmem:[%s5 + $0x58] sm:$0xff] %v403
  %436 = vst [vmem:[%s5 + $0x60] sm:$0xff] %v404
  %437 = vst [vmem:[%s5 + $0x68] sm:$0xff] %v405
  %438 = vst [vmem:[%s5 + $0x70] sm:$0xff] %v406
  %439 = vst [vmem:[%s5 + $0x78] sm:$0xff] %v407
  %440 = vst [vmem:[%s5 + $0x80] sm:$0xff] %v408
  %441 = vst [vmem:[%s5 + $0x88] sm:$0xff] %v409
  %442 = vst [vmem:[%s5 + $0x90] sm:$0xff] %v410
  %443 = vst [vmem:[%s5 + $0x98] sm:$0xff] %v411
  %444 = vst [vmem:[%s5 + $0xa0] sm:$0xff] %v412
  %445 = vst [vmem:[%s5 + $0xa8] sm:$0xff] %v413
  %446 = vst [vmem:[%s5 + $0xb0] sm:$0xff] %v414
  %447 = vst [vmem:[%s5 + $0xb8] sm:$0xff] %v415
  %448 = vst [vmem:[%s5 + $0xc0] sm:$0xff] %v416
  %449 = vst [vmem:[%s5 + $0xc8] sm:$0xff] %v417
  %450 = vst [vmem:[%s5 + $0xd0] sm:$0xff] %v418
  %451 = vst [vmem:[%s5 + $0xd8] sm:$0xff] %v419
  %452 = vst [vmem:[%s5 + $0xe0] sm:$0xff] %v420
  %453 = vst [vmem:[%s5 + $0xe8] sm:$0xff] %v421
  %454 = vst [vmem:[%s5 + $0xf0] sm:$0xff] %v422
  %455 = vst [vmem:[%s5 + $0xf8] sm:$0xff] %v423
  %v456 = vadd.f32 %v392, %v393
  %v457 = vadd.f32 %v456, %v394
  %v458 = vadd.f32 %v457, %v395
  %v459 = vadd.f32 %v458, %v396
  %v460 = vadd.f32 %v459, %v397
  %v461 = vadd.f32 %v460, %v398
  %v462 = vadd.f32 %v461, %v399
  %v463 = vadd.f32 %v462, %v400
  %v464 = vadd.f32 %v463, %v401
  %v465 = vadd.f32 %v464, %v402
  %v466 = vadd.f32 %v465, %v403
  %v467 = vadd.f32 %v466, %v404
  %v468 = vadd.f32 %v467, %v405
  %v469 = vadd.f32 %v468, %v406
  %v470 = vadd.f32 %v469, %v407
  %v471 = vadd.f32 %v470, %v408
  %v472 = vadd.f32 %v471, %v409
  %v473 = vadd.f32 %v472, %v410
  %v474 = vadd.f32 %v473, %v411
  %v475 = vadd.f32 %v474, %v412
  %v476 = vadd.f32 %v475, %v413
  %v477 = vadd.f32 %v476, %v414
  %v478 = vadd.f32 %v477, %v415
  %v479 = vadd.f32 %v478, %v416
  %v480 = vadd.f32 %v479, %v417
  %v481 = vadd.f32 %v480, %v418
  %v482 = vadd.f32 %v481, %v419
  %v483 = vadd.f32 %v482, %v420
  %v484 = vadd.f32 %v483, %v421
  %v485 = vadd.f32 %v484, %v422
  %v486 = vadd.f32 %v485, %v423
  %v487 = vrot.slane %v486, 4
  %v488 = vadd.f32 %v486, %v487
  %v489 = vrot.slane %v488, 2
  %v490 = vadd.f32 %v488, %v489
  %v491 = vrot.slane %v490, 1
  %v492 = vadd.f32 %v490, %v491
  %v493 = vrcp.pop 256.0
  %v494 = vmul.f32 %v492, %v493
  %v495 = vld [vmem:[%s3] sm:$0xff]
  %v496 = vld [vmem:[%s3 + $0x8] sm:$0xff]
  %v497 = vld [vmem:[%s3 + $0x10] sm:$0xff]
  %v498 = vld [vmem:[%s3 + $0x18] sm:$0xff]
  %v499 = vld [vmem:[%s3 + $0x20] sm:$0xff]
  %v500 = vld [vmem:[%s3 + $0x28] sm:$0xff]
  %v501 = vld [vmem:[%s3 + $0x30] sm:$0xff]
  %v502 = vld [vmem:[%s3 + $0x38] sm:$0xff]
  %v503 = vld [vmem:[%s3 + $0x40] sm:$0xff]
  %v504 = vld [vmem:[%s3 + $0x48] sm:$0xff]
  %v505 = vld [vmem:[%s3 + $0x50] sm:$0xff]
  %v506 = vld [vmem:[%s3 + $0x58] sm:$0xff]
  %v507 = vld [vmem:[%s3 + $0x60] sm:$0xff]
  %v508 = vld [vmem:[%s3 + $0x68] sm:$0xff]
  %v509 = vld [vmem:[%s3 + $0x70] sm:$0xff]
  %v510 = vld [vmem:[%s3 + $0x78] sm:$0xff]
  %v511 = vld [vmem:[%s4] sm:$0x1]
  %512 = vmatprep.subr.mxu0 0.0
  %513 = vmatpush1.msra.mxu0 %v495
  %514 = vmatprep.subr.mxu0 0.0
  %515 = vmatpush1.msra.mxu0 %v496
  %516 = vmatprep.subr.mxu0 0.0
  %517 = vmatpush1.msra.mxu0 %v497
  %518 = vmatprep.subr.mxu0 0.0
  %519 = vmatpush1.msra.mxu0 %v498
  %520 = vmatprep.subr.mxu0 0.0
  %521 = vmatpush1.msra.mxu0 %v499
  %522 = vmatprep.subr.mxu0 0.0
  %523 = vmatpush1.msra.mxu0 %v500
  %524 = vmatprep.subr.mxu0 0.0
  %525 = vmatpush1.msra.mxu0 %v501
  %526 = vmatprep.subr.mxu0 0.0
  %527 = vmatpush1.msra.mxu0 %v502
  %528 = vmatprep.subr.mxu0 0.0
  %529 = vmatpush1.msra.mxu0 %v503
  %530 = vmatprep.subr.mxu0 0.0
  %531 = vmatpush1.msra.mxu0 %v504
  %532 = vmatprep.subr.mxu0 0.0
  %533 = vmatpush1.msra.mxu0 %v505
  %534 = vmatprep.subr.mxu0 0.0
  %535 = vmatpush1.msra.mxu0 %v506
  %536 = vmatprep.subr.mxu0 0.0
  %537 = vmatpush1.msra.mxu0 %v507
  %538 = vmatprep.subr.mxu0 0.0
  %539 = vmatpush1.msra.mxu0 %v508
  %540 = vmatprep.subr.mxu0 0.0
  %541 = vmatpush1.msra.mxu0 %v509
  %542 = vmatprep.subr.mxu0 0.0
  %543 = vmatpush1.msra.mxu0 %v510
  %544 = vmatprep.subr.mxu0 0.0
  %545 = vmatpush1.msra.mxu0 0.0
  %546 = vmatprep.subr.mxu0 0.0
  %547 = vmatpush1.msra.mxu0 0.0
  %548 = vmatprep.subr.mxu0 0.0
  %549 = vmatpush1.msra.mxu0 0.0
  %550 = vmatprep.subr.mxu0 0.0
  %551 = vmatpush1.msra.mxu0 0.0
  %552 = vmatprep.subr.mxu0 0.0
  %553 = vmatpush1.msra.mxu0 0.0
  %554 = vmatprep.subr.mxu0 0.0
  %555 = vmatpush1.msra.mxu0 0.0
  %556 = vmatprep.subr.mxu0 0.0
  %557 = vmatpush1.msra.mxu0 0.0
  %558 = vmatprep.subr.mxu0 0.0
  %559 = vmatpush1.msra.mxu0 0.0
  %560 = vmatprep.subr.mxu0 0.0
  %561 = vmatpush1.msra.mxu0 0.0
  %562 = vmatprep.subr.mxu0 0.0
  %563 = vmatpush1.msra.mxu0 0.0
  %564 = vmatprep.subr.mxu0 0.0
  %565 = vmatpush1.msra.mxu0 0.0
  %566 = vmatprep.subr.mxu0 0.0
  %567 = vmatpush1.msra.mxu0 0.0
  %568 = vmatprep.subr.mxu0 0.0
  %569 = vmatpush1.msra.mxu0 0.0
  %570 = vmatprep.subr.mxu0 0.0
  %571 = vmatpush1.msra.mxu0 0.0
  %572 = vmatprep.subr.mxu0 0.0
  %573 = vmatpush1.msra.mxu0 0.0
  %574 = vmatprep.subr.mxu0 0.0
  %575 = vmatpush1.msra.mxu0 0.0
  %576 = vmatprep.mubr.f32.mxu0 0.0
  %577 = vmatmul.mubr.f32.gmra.mrb[0].mxu0 %v494
  %v578 = vpop.f32.mrb[0].mxu0
  %v579 = vadd.f32 %v511, %v578
  %v580 = vpop.f32.mrb[0].mxu0
  %581 = vdwg.mxu0
  %582 = vst [vmem:[%s6] sm:$0x1] %v579
  // Predicated region
  $region22: #{generalized_rcnn_forward.1} parent=0 // pred_check
    _
  $region23: #{generalized_rcnn_forward.1} parent=0 // pred_check_branch
    %584 = sbr.rel (0) target = $region25
  $region24: #{generalized_rcnn_forward.1} parent=0 // pred_region
    _
  $region25: #{generalized_rcnn_forward.1} parent=0 // pred_fallthru
    _
  // Predicated region
  $region26: #{generalized_rcnn_forward.1} parent=0 // pred_check
    _
  $region27: #{generalized_rcnn_forward.1} parent=0 // pred_check_branch
    %586 = sbr.rel (0) target = $region29
  $region28: #{generalized_rcnn_forward.1} parent=0 // pred_region
    _
  $region29: #{generalized_rcnn_forward.1} parent=0 // pred_fallthru
    _
  // Predicated region
  $region30: #{generalized_rcnn_forward.1} parent=0 // pred_check
    _
  $region31: #{generalized_rcnn_forward.1} parent=0 // pred_check_branch
    %588 = sbr.rel (0) target = $region33
  $region32: #{generalized_rcnn_forward.1} parent=0 // pred_region
    _
  $region33: #{generalized_rcnn_forward.1} parent=0 // pred_fallthru
    _
  // Predicated region
  $region34: #{generalized_rcnn_forward.1} parent=0 // pred_check
    _
  $region35: #{generalized_rcnn_forward.1} parent=0 // pred_check_branch
    %590 = sbr.rel (0) target = $region37
  $region36: #{generalized_rcnn_forward.1} parent=0 // pred_region
    _
  $region37: #{generalized_rcnn_forward.1} parent=0 // pred_fallthru
    _

</llo_original>
